<compile_context>
chip_gen: v6e
topology: v6e:2x2x1
jax: 0.10.0
libtpu: 0.0.40
codegen_flags: <defaults>
</compile_context>

<pallas_src>
import functools

import jax
import jax.numpy as jnp
from jax import lax
from jax.experimental import pallas as pl
from jax.experimental.pallas import tpu as pltpu


# -----------------------------------------------------------------------------
# Stage 1: K/V projection (x @ W_kv + b_kv) -> k, v slabs.
# -----------------------------------------------------------------------------
def kv_proj_kernel(x_ref, wkv_ref, bkv_ref, k_ref, v_ref, *, inner):
    x = x_ref[0]                                                   # (tn, D)
    kv = jnp.dot(x, wkv_ref[...],
                 preferred_element_type=jnp.float32) + bkv_ref[...]  # (tn, 2*inner) f32
    k_ref[0] = kv[:, :inner].astype(k_ref.dtype)
    v_ref[0] = kv[:, inner:2 * inner].astype(v_ref.dtype)


# -----------------------------------------------------------------------------
# Stage 2: fused Q projection + per-head attention + output projection.
# -----------------------------------------------------------------------------
def attention_kernel(x_ref, wq_ref, bq_ref, k_ref, v_ref, wo_ref, bo_ref, o_ref,
                     *, heads, dim_head, n_valid, scale):
    x = x_ref[0]                                                   # (tq, D)
    # Fused Q projection; the attention scale is folded into q (scaling the
    # linear output, bias included, is identical to scaling the dots).
    q_all = (jnp.dot(x, wq_ref[...], preferred_element_type=jnp.float32)
             + bq_ref[...]) * scale                                # (tq, inner) f32
    q_all = q_all.astype(x.dtype)

    k_all = k_ref[0]                                               # (Npad, inner)
    v_all = v_ref[0]
    n_keys = k_all.shape[0]
    tq = q_all.shape[0]

    # Key-padding bias, computed once outside the head loop (broadcast hoisted;
    # JAX does not CSE broadcast_in_dim).
    if n_valid < n_keys:
        col = lax.broadcasted_iota(jnp.int32, (tq, n_keys), 1)
        mask_bias = jnp.where(col < n_valid, 0.0, -1e30).astype(jnp.float32)
    else:
        mask_bias = None

    head_outs = []
    for h in range(heads):                      # contiguous lane slices per head
        lo = h * dim_head
        hi = lo + dim_head
        q_h = q_all[:, lo:hi]                   # (tq, dh)
        k_h = k_all[:, lo:hi]                   # (Npad, dh)
        v_h = v_all[:, lo:hi]                   # (Npad, dh)

        # scores: q_h @ k_h^T  (contract last axes; no transposes/relayouts)
        s = lax.dot_general(q_h, k_h, (((1,), (1,)), ((), ())),
                            preferred_element_type=jnp.float32)    # (tq, Npad)
        if mask_bias is not None:
            s = s + mask_bias

        # numerically-stable softmax; normalization deferred past attn@v
        m = jnp.max(s, axis=-1, keepdims=True)
        e = jnp.exp(s - m)
        denom = jnp.sum(e, axis=-1, keepdims=True)                 # (tq, 1)

        o_h = lax.dot_general(e.astype(v_h.dtype), v_h,
                              (((1,), (0,)), ((), ())),
                              preferred_element_type=jnp.float32)  # (tq, dh)
        # deferred normalization on (tq, dh) only; reciprocal goes to the EUP slot
        head_outs.append(o_h * pl.reciprocal(denom, approx=True))

    # One lane-axis concatenate instead of heads x masked column stores into a
    # VMEM scratch (no acc_ref, no (tq, inner) VMEM round-trip).
    attn_out = jnp.concatenate(head_outs, axis=-1)                 # (tq, inner) f32

    out = jnp.dot(attn_out.astype(wo_ref.dtype), wo_ref[...],
                  preferred_element_type=jnp.float32) + bo_ref[...]
    o_ref[0] = out.astype(o_ref.dtype)


# -----------------------------------------------------------------------------
# pallas_call plumbing
# -----------------------------------------------------------------------------
def _run_kernels(x_c, w_q, b_q, w_kv, b_kv, w_out_c, b_out_f, *, heads, dim_head,
                 n_valid, scale, out_dtype, single_buffer):
    B, Npad, D = x_c.shape
    inner = heads * dim_head
    tn = 128
    tq = 128   # see TODO above: tq=256 is a v6e win for padded N >= 256

    # Single-buffer the grid-invariant / batch-invariant blocks; halves their
    # VMEM footprint (critical on v7x's 64 MiB VMEM) at the cost of at most one
    # pipeline stall per batch change.
    buf1 = {"pipeline_mode": pl.Buffered(1)} if single_buffer else {}

    cparams = pltpu.CompilerParams(
        dimension_semantics=("parallel", "parallel"),
        vmem_limit_bytes=64 * 1024 * 1024,
    )

    # ---- Stage 1: K/V projection --------------------------------------------
    k, v = pl.pallas_call(
        functools.partial(kv_proj_kernel, inner=inner),
        out_shape=(jax.ShapeDtypeStruct((B, Npad, inner), x_c.dtype),
                   jax.ShapeDtypeStruct((B, Npad, inner), x_c.dtype)),
        grid=(B, Npad // tn),
        in_specs=[
            pl.BlockSpec((1, tn, D),     lambda b, t: (b, t, 0)),
            pl.BlockSpec((D, 2 * inner), lambda b, t: (0, 0), **buf1),
            pl.BlockSpec((1, 2 * inner), lambda b, t: (0, 0), **buf1),
        ],
        out_specs=[
            pl.BlockSpec((1, tn, inner), lambda b, t: (b, t, 0)),
            pl.BlockSpec((1, tn, inner), lambda b, t: (b, t, 0)),
        ],
        compiler_params=cparams,
    )(x_c, w_kv, b_kv)

    # ---- Stage 2: fused Q proj + attention + output projection --------------
    out = pl.pallas_call(
        functools.partial(attention_kernel, heads=heads, dim_head=dim_head,
                          n_valid=n_valid, scale=scale),
        out_shape=jax.ShapeDtypeStruct((B, Npad, D), out_dtype),
        grid=(B, Npad // tq),
        in_specs=[
            pl.BlockSpec((1, tq, D),       lambda b, t: (b, t, 0)),           # x tile
            pl.BlockSpec((D, inner),       lambda b, t: (0, 0), **buf1),      # W_q
            pl.BlockSpec((1, inner),       lambda b, t: (0, 0), **buf1),      # b_q
            pl.BlockSpec((1, Npad, inner), lambda b, t: (b, 0, 0), **buf1),   # full K
            pl.BlockSpec((1, Npad, inner), lambda b, t: (b, 0, 0), **buf1),   # full V
            pl.BlockSpec((inner, D),       lambda b, t: (0, 0), **buf1),      # W_out
            pl.BlockSpec((1, D),           lambda b, t: (0, 0), **buf1),      # b_out
        ],
        out_specs=pl.BlockSpec((1, tq, D), lambda b, t: (b, t, 0)),
        compiler_params=cparams,
    )(x_c, w_q, b_q, k, v, w_out_c, b_out_f)
    return out


# -----------------------------------------------------------------------------
# Wrapper
# -----------------------------------------------------------------------------
def attention_forward(x, w_qkv, b_qkv, w_out, b_out, *, heads, dim_head,
                      compute_dtype=None):
    """x: (B, N, D); w_qkv: (D, 3*H*dh); b_qkv: (1, 3*H*dh);
       w_out: (H*dh, D); b_out: (1, D).  Returns (out, None)."""
    B, N, D = x.shape
    inner = heads * dim_head
    scale = dim_head ** -0.5

    if compute_dtype is None:
        # bf16 matmuls with f32 accumulation: full-rate MXU and half the HBM
        # traffic for the K/V intermediates when callers pass f32.
        compute_dtype = jnp.bfloat16 if x.dtype == jnp.float32 else x.dtype

    # Pad the token axis to a multiple of 128: (8,128)-aligned blocks,
    # lane-dense score tiles, token-axis pipelining.  Padded keys are masked
    # inside the kernel; padded query rows are sliced off below.
    Npad = ((N + 127) // 128) * 128
    x_p = jnp.pad(x, ((0, 0), (0, Npad - N), (0, 0))) if Npad != N else x
    x_c = x_p.astype(compute_dtype)

    # Split the fused QKV weight: q columns feed the stage-2 fused Q projection,
    # k/v columns feed stage 1 -> the (B,N,inner) q slab never touches HBM.
    w_q = w_qkv[:, :inner].astype(compute_dtype)
    w_kv = w_qkv[:, inner:].astype(compute_dtype)
    b_q = b_qkv[:, :inner].astype(jnp.float32)
    b_kv = b_qkv[:, inner:].astype(jnp.float32)
    w_out_c = w_out.astype(compute_dtype)
    b_out_f = b_out.astype(jnp.float32)

    def run(single_buffer):
        out = _run_kernels(x_c, w_q, b_q, w_kv, b_kv, w_out_c, b_out_f,
                           heads=heads, dim_head=dim_head, n_valid=N,
                           scale=scale, out_dtype=x.dtype,
                           single_buffer=single_buffer)
        return jax.block_until_ready(out)

    try:
        out_p = run(True)
    except Exception:
        # pl.Buffered(1) not supported on this jax build -> default buffering.
        out_p = run(False)

    out = out_p[:, :N, :] if Npad != N else out_p
    # vis=False in the reference module -> attention weights are not returned.
    # Dropout p=0.0 -> identity.
    # TODO(synk): the heads==1 & dim_head==dim Identity to_out branch is not
    # modeled; the wrapper assumes w_out/b_out exist (project_out=True).
    return out, None


# -----------------------------------------------------------------------------
# Pure-JAX reference for correctness checking.
# -----------------------------------------------------------------------------
def attention_reference(x, w_qkv, b_qkv, w_out, b_out, *, heads, dim_head):
    B, N, D = x.shape
    inner = heads * dim_head
    scale = dim_head ** -0.5
    qkv = jnp.einsum('bnd,de->bne', x, w_qkv) + b_qkv[0]
    q, k, v = jnp.split(qkv, 3, axis=-1)

    def to_heads(t):
        return jnp.transpose(t.reshape(B, N, heads, dim_head), (0, 2, 1, 3))

    q, k, v = map(to_heads, (q, k, v))
    dots = jnp.einsum('bhnd,bhmd->bhnm', q, k) * scale
    attn = jax.nn.softmax(dots, axis=-1)
    out = jnp.einsum('bhnm,bhmd->bhnd', attn, v)
    out = jnp.transpose(out, (0, 2, 1, 3)).reshape(B, N, inner)
    return jnp.einsum('bne,ed->bnd', out, w_out) + b_out[0]


if __name__ == "__main__":
    # Small shapes consistent with the module: dim % heads == 0.
    B, N, D = 2, 8, 32
    heads, dim_head = 4, 8
    inner = heads * dim_head   # 32

    key = jax.random.PRNGKey(0)
    kx, k1, k2, k3, k4 = jax.random.split(key, 5)

    x = jax.random.normal(kx, (B, N, D), dtype=jnp.float32)
    # Deterministic synthetic parameters (shapes match nn.Linear in __init__,
    # stored pre-transposed as (in_features, out_features)).
    w_qkv = 0.05 * jax.random.normal(k1, (D, 3 * inner), dtype=jnp.float32)
    b_qkv = 0.01 * jax.random.normal(k2, (1, 3 * inner), dtype=jnp.float32)
    w_out = 0.05 * jax.random.normal(k3, (inner, D), dtype=jnp.float32)
    b_out = 0.01 * jax.random.normal(k4, (1, D), dtype=jnp.float32)

    out, weights = attention_forward(x, w_qkv, b_qkv, w_out, b_out,
                                     heads=heads, dim_head=dim_head)
    out = jax.block_until_ready(out)

    ref = attention_reference(x, w_qkv, b_qkv, w_out, b_out,
                              heads=heads, dim_head=dim_head)
    assert out.shape == (B, N, D)
    assert weights is None
    # bf16 compute path + approx reciprocal -> loose-but-tight-enough tolerance.
    assert jnp.allclose(out, ref, atol=2e-2, rtol=2e-2), "mismatch vs reference"

    print("KERNEL_OK")
</pallas_src>

<mosaic_0001>
module attributes {stable_mosaic.version = 11 : i64} {
  func.func @kv_proj_kernel(%arg0: i32, %arg1: i32, %arg2: memref<1x128x32xbf16, #tpu.memory_space<vmem>>, %arg3: memref<32x64xbf16, #tpu.memory_space<vmem>>, %arg4: memref<1x64xf32, #tpu.memory_space<vmem>>, %arg5: memref<1x128x32xbf16, #tpu.memory_space<vmem>>, %arg6: memref<1x128x32xbf16, #tpu.memory_space<vmem>>) attributes {dimension_semantics = [#tpu.dimension_semantics<parallel>, #tpu.dimension_semantics<parallel>], iteration_bounds = array<i64: 2, 1>, scalar_prefetch = 0 : i64, scratch_operands = 0 : i64, tpu.core_type = #tpu.core_type<tc>, window_params = [{transform_indices = @transform_0, window_bounds = array<i64: 1, 128, 32>}, {pipeline_mode = #tpu.pipeline_mode<synchronous>, transform_indices = @transform_1, window_bounds = array<i64: 32, 64>}, {pipeline_mode = #tpu.pipeline_mode<synchronous>, transform_indices = @transform_2, window_bounds = array<i64: 1, 64>}, {transform_indices = @transform_3, window_bounds = array<i64: 1, 128, 32>}, {transform_indices = @transform_4, window_bounds = array<i64: 1, 128, 32>}]} {
    %c0 = arith.constant 0 : index
    %c0_0 = arith.constant 0 : index
    %c0_1 = arith.constant 0 : index
    %0 = vector.load %arg2[%c0, %c0_0, %c0_1] : memref<1x128x32xbf16, #tpu.memory_space<vmem>>, vector<1x128x32xbf16>
    %1 = vector.shape_cast %0 : vector<1x128x32xbf16> to vector<128x32xbf16>
    %c0_2 = arith.constant 0 : index
    %c0_3 = arith.constant 0 : index
    %2 = vector.load %arg3[%c0_2, %c0_3] : memref<32x64xbf16, #tpu.memory_space<vmem>>, vector<32x64xbf16>
    %cst = arith.constant dense<0.000000e+00> : vector<128x64xf32>
    %3 = tpu.matmul %1, %2, %cst {dimension_numbers = #tpu.dot_dimension_numbers<[1], [0], [0], [1], [0, 0, 1, 1], [], []>} : vector<128x32xbf16>, vector<32x64xbf16>, vector<128x64xf32> -> vector<128x64xf32>
    %c0_4 = arith.constant 0 : index
    %c0_5 = arith.constant 0 : index
    %4 = vector.load %arg4[%c0_4, %c0_5] : memref<1x64xf32, #tpu.memory_space<vmem>>, vector<1x64xf32>
    %5 = vector.broadcast %4 : vector<1x64xf32> to vector<128x64xf32>
    %6 = arith.addf %3, %5 : vector<128x64xf32>
    %7 = vector.extract_strided_slice %6 {offsets = [0, 0], sizes = [128, 32], strides = [1, 1]} : vector<128x64xf32> to vector<128x32xf32>
    %8 = arith.truncf %7 : vector<128x32xf32> to vector<128x32xbf16>
    %c0_6 = arith.constant 0 : index
    %c0_7 = arith.constant 0 : index
    %c0_8 = arith.constant 0 : index
    %9 = vector.load %arg5[%c0_6, %c0_7, %c0_8] : memref<1x128x32xbf16, #tpu.memory_space<vmem>>, vector<1x128x32xbf16>
    %10 = vector.shape_cast %9 : vector<1x128x32xbf16> to vector<128x32xbf16>
    %11 = vector.shape_cast %8 : vector<128x32xbf16> to vector<1x128x32xbf16>
    tpu.vector_store %arg5[%c0_6, %c0_7, %c0_8], %11 {strides = array<i32>} : memref<1x128x32xbf16, #tpu.memory_space<vmem>>, vector<1x128x32xbf16>,
    %12 = vector.extract_strided_slice %6 {offsets = [0, 32], sizes = [128, 32], strides = [1, 1]} : vector<128x64xf32> to vector<128x32xf32>
    %13 = arith.truncf %12 : vector<128x32xf32> to vector<128x32xbf16>
    %c0_9 = arith.constant 0 : index
    %c0_10 = arith.constant 0 : index
    %c0_11 = arith.constant 0 : index
    %14 = vector.load %arg6[%c0_9, %c0_10, %c0_11] : memref<1x128x32xbf16, #tpu.memory_space<vmem>>, vector<1x128x32xbf16>
    %15 = vector.shape_cast %14 : vector<1x128x32xbf16> to vector<128x32xbf16>
    %16 = vector.shape_cast %13 : vector<128x32xbf16> to vector<1x128x32xbf16>
    tpu.vector_store %arg6[%c0_9, %c0_10, %c0_11], %16 {strides = array<i32>} : memref<1x128x32xbf16, #tpu.memory_space<vmem>>, vector<1x128x32xbf16>,
    return
  }
  func.func @transform_0(%arg0: i32, %arg1: i32) -> (i32, i32, i32) {
    %c0_i32 = arith.constant 0 : i32
    %c0_i32_0 = arith.constant 0 : i32
    return %arg0, %arg1, %c0_i32 : i32, i32, i32
  }
  func.func @transform_1(%arg0: i32, %arg1: i32) -> (i32, i32) {
    %c0_i32 = arith.constant 0 : i32
    %c0_i32_0 = arith.constant 0 : i32
    %c0_i32_1 = arith.constant 0 : i32
    return %c0_i32, %c0_i32_0 : i32, i32
  }
  func.func @transform_2(%arg0: i32, %arg1: i32) -> (i32, i32) {
    %c0_i32 = arith.constant 0 : i32
    %c0_i32_0 = arith.constant 0 : i32
    %c0_i32_1 = arith.constant 0 : i32
    return %c0_i32, %c0_i32_0 : i32, i32
  }
  func.func @transform_3(%arg0: i32, %arg1: i32) -> (i32, i32, i32) {
    %c0_i32 = arith.constant 0 : i32
    %c0_i32_0 = arith.constant 0 : i32
    return %arg0, %arg1, %c0_i32 : i32, i32, i32
  }
  func.func @transform_4(%arg0: i32, %arg1: i32) -> (i32, i32, i32) {
    %c0_i32 = arith.constant 0 : i32
    %c0_i32_0 = arith.constant 0 : i32
    return %arg0, %arg1, %c0_i32 : i32, i32, i32
  }
}

module attributes {stable_mosaic.version = 11 : i64} {
  func.func @kv_proj_kernel(%arg0: i32, %arg1: i32, %arg2: memref<1x128x32xbf16, #tpu.memory_space<vmem>>, %arg3: memref<32x64xbf16, #tpu.memory_space<vmem>>, %arg4: memref<1x64xf32, #tpu.memory_space<vmem>>, %arg5: memref<1x128x32xbf16, #tpu.memory_space<vmem>>, %arg6: memref<1x128x32xbf16, #tpu.memory_space<vmem>>) attributes {dimension_semantics = [#tpu.dimension_semantics<parallel>, #tpu.dimension_semantics<parallel>], iteration_bounds = array<i64: 2, 1>, scalar_prefetch = 0 : i64, scratch_operands = 0 : i64, tpu.core_type = #tpu.core_type<tc>, window_params = [{transform_indices = @transform_0, window_bounds = array<i64: 1, 128, 32>}, {pipeline_mode = #tpu.pipeline_mode<synchronous>, transform_indices = @transform_1, window_bounds = array<i64: 32, 64>}, {pipeline_mode = #tpu.pipeline_mode<synchronous>, transform_indices = @transform_2, window_bounds = array<i64: 1, 64>}, {transform_indices = @transform_3, window_bounds = array<i64: 1, 128, 32>}, {transform_indices = @transform_4, window_bounds = array<i64: 1, 128, 32>}]} {
    %c0 = arith.constant 0 : index
    %c0_0 = arith.constant 0 : index
    %c0_1 = arith.constant 0 : index
    %0 = vector.load %arg2[%c0, %c0_0, %c0_1] : memref<1x128x32xbf16, #tpu.memory_space<vmem>>, vector<1x128x32xbf16>
    %1 = vector.shape_cast %0 : vector<1x128x32xbf16> to vector<128x32xbf16>
    %c0_2 = arith.constant 0 : index
    %c0_3 = arith.constant 0 : index
    %2 = vector.load %arg3[%c0_2, %c0_3] : memref<32x64xbf16, #tpu.memory_space<vmem>>, vector<32x64xbf16>
    %cst = arith.constant dense<0.000000e+00> : vector<128x64xf32>
    %3 = tpu.matmul %1, %2, %cst {dimension_numbers = #tpu.dot_dimension_numbers<[1], [0], [0], [1], [0, 0, 1, 1], [], []>} : vector<128x32xbf16>, vector<32x64xbf16>, vector<128x64xf32> -> vector<128x64xf32>
    %c0_4 = arith.constant 0 : index
    %c0_5 = arith.constant 0 : index
    %4 = vector.load %arg4[%c0_4, %c0_5] : memref<1x64xf32, #tpu.memory_space<vmem>>, vector<1x64xf32>
    %5 = vector.broadcast %4 : vector<1x64xf32> to vector<128x64xf32>
    %6 = arith.addf %3, %5 : vector<128x64xf32>
    %7 = vector.extract_strided_slice %6 {offsets = [0, 0], sizes = [128, 32], strides = [1, 1]} : vector<128x64xf32> to vector<128x32xf32>
    %8 = arith.truncf %7 : vector<128x32xf32> to vector<128x32xbf16>
    %c0_6 = arith.constant 0 : index
    %c0_7 = arith.constant 0 : index
    %c0_8 = arith.constant 0 : index
    %9 = vector.load %arg5[%c0_6, %c0_7, %c0_8] : memref<1x128x32xbf16, #tpu.memory_space<vmem>>, vector<1x128x32xbf16>
    %10 = vector.shape_cast %9 : vector<1x128x32xbf16> to vector<128x32xbf16>
    %11 = vector.shape_cast %8 : vector<128x32xbf16> to vector<1x128x32xbf16>
    tpu.vector_store %arg5[%c0_6, %c0_7, %c0_8], %11 {strides = array<i32>} : memref<1x128x32xbf16, #tpu.memory_space<vmem>>, vector<1x128x32xbf16>,
    %12 = vector.extract_strided_slice %6 {offsets = [0, 32], sizes = [128, 32], strides = [1, 1]} : vector<128x64xf32> to vector<128x32xf32>
    %13 = arith.truncf %12 : vector<128x32xf32> to vector<128x32xbf16>
    %c0_9 = arith.constant 0 : index
    %c0_10 = arith.constant 0 : index
    %c0_11 = arith.constant 0 : index
    %14 = vector.load %arg6[%c0_9, %c0_10, %c0_11] : memref<1x128x32xbf16, #tpu.memory_space<vmem>>, vector<1x128x32xbf16>
    %15 = vector.shape_cast %14 : vector<1x128x32xbf16> to vector<128x32xbf16>
    %16 = vector.shape_cast %13 : vector<128x32xbf16> to vector<1x128x32xbf16>
    tpu.vector_store %arg6[%c0_9, %c0_10, %c0_11], %16 {strides = array<i32>} : memref<1x128x32xbf16, #tpu.memory_space<vmem>>, vector<1x128x32xbf16>,
    return
  }
  func.func @transform_0(%arg0: i32, %arg1: i32) -> (i32, i32, i32) {
    %c0_i32 = arith.constant 0 : i32
    %c0_i32_0 = arith.constant 0 : i32
    return %arg0, %arg1, %c0_i32 : i32, i32, i32
  }
  func.func @transform_1(%arg0: i32, %arg1: i32) -> (i32, i32) {
    %c0_i32 = arith.constant 0 : i32
    %c0_i32_0 = arith.constant 0 : i32
    %c0_i32_1 = arith.constant 0 : i32
    return %c0_i32, %c0_i32_0 : i32, i32
  }
  func.func @transform_2(%arg0: i32, %arg1: i32) -> (i32, i32) {
    %c0_i32 = arith.constant 0 : i32
    %c0_i32_0 = arith.constant 0 : i32
    %c0_i32_1 = arith.constant 0 : i32
    return %c0_i32, %c0_i32_0 : i32, i32
  }
  func.func @transform_3(%arg0: i32, %arg1: i32) -> (i32, i32, i32) {
    %c0_i32 = arith.constant 0 : i32
    %c0_i32_0 = arith.constant 0 : i32
    return %arg0, %arg1, %c0_i32 : i32, i32, i32
  }
  func.func @transform_4(%arg0: i32, %arg1: i32) -> (i32, i32, i32) {
    %c0_i32 = arith.constant 0 : i32
    %c0_i32_0 = arith.constant 0 : i32
    return %arg0, %arg1, %c0_i32 : i32, i32, i32
  }
}

</mosaic_0001>

<llo_original>
// kernel: tpu_custom_call.1
$region0: #{tpu_custom_call.1}
  #allocation0 [shape = 'u32[]', space=smem, size = 0x4, offset = 0x4, fixed_abs, tag = 'smem constant byte address 0x4 - core index']
  #allocation1 [shape = 'u32[144,128]{1,0:T(1,128)}', space=vmem, size = 0x12000, scoped, tag = 'internal scratch']
  %s0 = inlined_call_operand.vmem [shape: bf16[2,128,32], index: 0, kind: input, shape index: {}]
  %s1 = inlined_call_operand.vmem [shape: bf16[32,64], index: 1, kind: input, shape index: {}]
  %s2 = inlined_call_operand.vmem [shape: f32[1,64], index: 2, kind: input, shape index: {}]
  %s3 = inlined_call_operand.vmem [shape: bf16[2,128,32], index: 3, kind: output, shape index: {0}]
  %s4 = inlined_call_operand.vmem [shape: bf16[2,128,32], index: 4, kind: output, shape index: {1}]
  %5 = xla_tuple %s3, %s4
  %s6 = sld [smem:[#allocation0]]
  $region53: #{tpu_custom_call.1} parent=0
    _
  %s8 = ssub.s32 1, %s6
  %s9 = scalar_select 0, %s8, %s6
  loop: start=0, step=1, limit=4
  $region2: #{tpu_custom_call.1} parent=0 // loop_pre_header
    _
  $region3: #{tpu_custom_call.1} parent=0 // loop_header
    %s11 = sphi 0, %s15
    %p12 = scmp.ge.s32.totalorder %s11, 4
    %s18 = sphi 0, %s30
    %s19 = sphi 0, %s26
    %s20 = sphi 0, %s18
    %s21 = sphi 0, %s19
    %s22 = sphi 0, %s20
    %s23 = sphi 0, %s21
    %s35 = sphi 0, %s37
    %s38 = sphi 0, %s35
    %s39 = sphi 0, %s38
    %s55 = sphi 0, %s39
    %s59 = sphi 0, %s59
    %s61 = sphi 0, %s59
    %s62 = sphi 0, %s61
    %s76 = sphi 0, %s62
    %s80 = sphi 0, %s80
    %s82 = sphi 0, %s80
    %s83 = sphi 0, %s82
    %s97 = sphi 0, %s83
    %s105 = sphi 0, %s107
    %s108 = sphi 0, %s105
    %s109 = sphi 0, %s108
    %s125 = sphi 0, %s109
    %s133 = sphi 0, %s135
    %s136 = sphi 0, %s133
    %s137 = sphi 0, %s136
    %s153 = sphi 0, %s137
  $region4: #{tpu_custom_call.1} parent=0 // loop_header_branch
    %14 = sbr.rel (%p12) target = $region8
  $region5: #{tpu_custom_call.1} parent=0 // loop_body
    %s16 = ssub.s32 %s11, 1
    %s17 = ssub.s32 %s11, 2
    %s24 = sadd.s32 1, %s19
    %p25 = scmp.ge.s32.totalorder %s24, 1
    %s26 = scalar_select %p25, 0, %s24
    %s27 = sadd.s32 1, %s18
    %s28 = scalar_select %p25, %s27, %s18
    %p29 = scmp.ge.s32.totalorder %s28, 2
    %s30 = scalar_select %p29, 0, %s28
    %s31 = ssub.s32 %s18, %s30
    %s32 = ssub.s32 %s19, %s26
    %s33 = sor.u32 %s31, %s32
    %p34 = scmp.eq.s32.totalorder %s33, 0
    %s36 = sadd.s32 %s35, 1
    %s37 = scalar_select %p34, %s35, %s36
    %p40 = pneg %p34
    %p41 = scmp.eq.s32.totalorder %s11, 1
    %p42 = por %p40, %p41
    %p43 = scmp.ne.s32.totalorder %s35, %s38
    %p44 = scmp.eq.s32.totalorder %s11, 0
    %p45 = por %p43, %p44
    %p46 = scmp.ne.s32.totalorder %s35, %s38
    %p47 = scmp.eq.s32.totalorder %s16, 1
    %p48 = por %p46, %p47
    %p49 = scmp.ne.s32.totalorder %s38, %s39
    %p50 = scmp.eq.s32.totalorder %s16, 0
    %p51 = por %p49, %p50
    %p52 = scmp.ne.s32.totalorder %s38, %s39
    %p53 = scmp.eq.s32.totalorder %s17, 1
    %p54 = por %p52, %p53
    %p56 = scmp.ne.s32.totalorder %s39, %s55
    %p57 = scmp.eq.s32.totalorder %s17, 0
    %p58 = por %p56, %p57
    %s60 = sadd.s32 %s59, 1
    %p63 = scmp.eq.s32.totalorder %s11, 1
    %p64 = scmp.ne.s32.totalorder %s59, %s61
    %p65 = scmp.eq.s32.totalorder %s11, 0
    %p66 = por %p64, %p65
    %p67 = scmp.ne.s32.totalorder %s59, %s61
    %p68 = scmp.eq.s32.totalorder %s16, 1
    %p69 = por %p67, %p68
    %p70 = scmp.ne.s32.totalorder %s61, %s62
    %p71 = scmp.eq.s32.totalorder %s16, 0
    %p72 = por %p70, %p71
    %p73 = scmp.ne.s32.totalorder %s61, %s62
    %p74 = scmp.eq.s32.totalorder %s17, 1
    %p75 = por %p73, %p74
    %p77 = scmp.ne.s32.totalorder %s62, %s76
    %p78 = scmp.eq.s32.totalorder %s17, 0
    %p79 = por %p77, %p78
    %s81 = sadd.s32 %s80, 1
    %p84 = scmp.eq.s32.totalorder %s11, 1
    %p85 = scmp.ne.s32.totalorder %s80, %s82
    %p86 = scmp.eq.s32.totalorder %s11, 0
    %p87 = por %p85, %p86
    %p88 = scmp.ne.s32.totalorder %s80, %s82
    %p89 = scmp.eq.s32.totalorder %s16, 1
    %p90 = por %p88, %p89
    %p91 = scmp.ne.s32.totalorder %s82, %s83
    %p92 = scmp.eq.s32.totalorder %s16, 0
    %p93 = por %p91, %p92
    %p94 = scmp.ne.s32.totalorder %s82, %s83
    %p95 = scmp.eq.s32.totalorder %s17, 1
    %p96 = por %p94, %p95
    %p98 = scmp.ne.s32.totalorder %s83, %s97
    %p99 = scmp.eq.s32.totalorder %s17, 0
    %p100 = por %p98, %p99
    %s101 = ssub.s32 %s18, %s30
    %s102 = ssub.s32 %s19, %s26
    %s103 = sor.u32 %s101, %s102
    %p104 = scmp.eq.s32.totalorder %s103, 0
    %s106 = sadd.s32 %s105, 1
    %s107 = scalar_select %p104, %s105, %s106
    %p110 = pneg %p104
    %p111 = scmp.eq.s32.totalorder %s11, 1
    %p112 = por %p110, %p111
    %p113 = scmp.ne.s32.totalorder %s105, %s108
    %p114 = scmp.eq.s32.totalorder %s11, 0
    %p115 = por %p113, %p114
    %p116 = scmp.ne.s32.totalorder %s105, %s108
    %p117 = scmp.eq.s32.totalorder %s16, 1
    %p118 = por %p116, %p117
    %p119 = scmp.ne.s32.totalorder %s108, %s109
    %p120 = scmp.eq.s32.totalorder %s16, 0
    %p121 = por %p119, %p120
    %p122 = scmp.ne.s32.totalorder %s108, %s109
    %p123 = scmp.eq.s32.totalorder %s17, 1
    %p124 = por %p122, %p123
    %p126 = scmp.ne.s32.totalorder %s109, %s125
    %p127 = scmp.eq.s32.totalorder %s17, 0
    %p128 = por %p126, %p127
    %s129 = ssub.s32 %s18, %s30
    %s130 = ssub.s32 %s19, %s26
    %s131 = sor.u32 %s129, %s130
    %p132 = scmp.eq.s32.totalorder %s131, 0
    %s134 = sadd.s32 %s133, 1
    %s135 = scalar_select %p132, %s133, %s134
    %p138 = pneg %p132
    %p139 = scmp.eq.s32.totalorder %s11, 1
    %p140 = por %p138, %p139
    %p141 = scmp.ne.s32.totalorder %s133, %s136
    %p142 = scmp.eq.s32.totalorder %s11, 0
    %p143 = por %p141, %p142
    %p144 = scmp.ne.s32.totalorder %s133, %s136
    %p145 = scmp.eq.s32.totalorder %s16, 1
    %p146 = por %p144, %p145
    %p147 = scmp.ne.s32.totalorder %s136, %s137
    %p148 = scmp.eq.s32.totalorder %s16, 0
    %p149 = por %p147, %p148
    %p150 = scmp.ne.s32.totalorder %s136, %s137
    %p151 = scmp.eq.s32.totalorder %s17, 1
    %p152 = por %p150, %p151
    %p154 = scmp.ne.s32.totalorder %s137, %s153
    %p155 = scmp.eq.s32.totalorder %s17, 0
    %p156 = por %p154, %p155
    %p157 = scmp.le.s32.totalorder 1, %s11
    %p158 = scmp.lt.s32.totalorder %s11, 3
    %p159 = pnand %p157, %p158
    %p160 = pneg %p159
    // Predicated region
    $region9: #{tpu_custom_call.1} parent=5 // pred_check
      _
    $region10: #{tpu_custom_call.1} parent=5 // pred_check_branch
      %162 = sbr.rel (%p159) target = $region12
    $region11: #{tpu_custom_call.1} parent=5 // pred_region
      %s163 = ssub.s32 %s11, 1
      // Predicated region
      $region13: #{tpu_custom_call.1} parent=11 // pred_check
        %p164 = pneg %p72
      $region14: #{tpu_custom_call.1} parent=11 // pred_check_branch
        %166 = sbr.rel (%p164) target = $region16
      $region15: #{tpu_custom_call.1} parent=11 // pred_region
        _
      $region16: #{tpu_custom_call.1} parent=11 // pred_fallthru
        _
      // Predicated region
      $region17: #{tpu_custom_call.1} parent=11 // pred_check
        %p167 = pneg %p93
      $region18: #{tpu_custom_call.1} parent=11 // pred_check_branch
        %169 = sbr.rel (%p167) target = $region20
      $region19: #{tpu_custom_call.1} parent=11 // pred_region
        _
      $region20: #{tpu_custom_call.1} parent=11 // pred_fallthru
        _
    $region12: #{tpu_custom_call.1} parent=5 // pred_fallthru
      _
    %p170 = scmp.lt.s32.totalorder %s11, 2
    // Predicated region
    $region21: #{tpu_custom_call.1} parent=5 // pred_check
      %p171 = pneg %p170
    $region22: #{tpu_custom_call.1} parent=5 // pred_check_branch
      %173 = sbr.rel (%p171) target = $region24
    $region23: #{tpu_custom_call.1} parent=5 // pred_region
      // Predicated region
      $region25: #{tpu_custom_call.1} parent=23 // pred_check
        %p174 = pneg %p45
      $region26: #{tpu_custom_call.1} parent=23 // pred_check_branch
        %176 = sbr.rel (%p174) target = $region28
      $region27: #{tpu_custom_call.1} parent=23 // pred_region
        %s177 = smul.u32 16, %s19
        %p178 = scmp.lt.s32.totalorder %s18, 1
        %s179 = scalar_select %p178, %s18, 1
        %p180 = scmp.lt.s32.totalorder %s177, 15
        %s181 = scalar_select %p180, %s177, 15
        %s182 = smul.addr %s179, 16
        %s183 = sadd.s32 %s181, %s182
        %s184 = smul.addr %s183, 4
        %s185 = scalar_lea.vmem %s0, %s184
        %s186 = smul.u32 16, %s19
      $region28: #{tpu_custom_call.1} parent=23 // pred_fallthru
        _
    $region24: #{tpu_custom_call.1} parent=5 // pred_fallthru
      _
    %p187 = scmp.le.s32.totalorder 1, %s11
    %p188 = scmp.lt.s32.totalorder %s11, 3
    %p189 = pnand %p187, %p188
    %p190 = pneg %p189
    // Predicated region
    $region29: #{tpu_custom_call.1} parent=5 // pred_check
      _
    $region30: #{tpu_custom_call.1} parent=5 // pred_check_branch
      %192 = sbr.rel (%p189) target = $region32
    $region31: #{tpu_custom_call.1} parent=5 // pred_region
      %s193 = ssub.s32 %s11, 1
      %s194 = smul.u32 16, %s21
      %p195 = scmp.lt.s32.totalorder %s20, 1
      %s196 = scalar_select %p195, %s20, 1
      %p197 = scmp.lt.s32.totalorder %s194, 15
      %s198 = scalar_select %p197, %s194, 15
      %s199 = smul.addr %s196, 16
      %s200 = sadd.s32 %s198, %s199
      %s201 = smul.addr %s200, 4
      %s202 = scalar_lea.vmem %s0, %s201
      %p203 = pneg %p51
      %p204 = pneg %p48
      %p205 = pneg %p72
      %p206 = pneg %p69
      %p207 = pneg %p93
      %p208 = pneg %p90
      %p209 = pneg %p121
      %p210 = pneg %p118
      %s211 = smul.u32 16, %s21
      %p212 = scmp.lt.s32.totalorder %s20, 1
      %s213 = scalar_select %p212, %s20, 1
      %p214 = scmp.lt.s32.totalorder %s211, 15
      %s215 = scalar_select %p214, %s211, 15
      %s216 = smul.addr %s213, 16
      %s217 = sadd.s32 %s215, %s216
      %s218 = smul.addr %s217, 4
      %s219 = scalar_lea.vmem %s3, %s218
      %p220 = pneg %p149
      %p221 = pneg %p146
      %s222 = smul.u32 16, %s21
      %p223 = scmp.lt.s32.totalorder %s20, 1
      %s224 = scalar_select %p223, %s20, 1
      %p225 = scmp.lt.s32.totalorder %s222, 15
      %s226 = scalar_select %p225, %s222, 15
      %s227 = smul.addr %s224, 16
      %s228 = sadd.s32 %s226, %s227
      %s229 = smul.addr %s228, 4
      %s230 = scalar_lea.vmem %s4, %s229
      %s231 = smul.u32 16, %s21
      %p232 = scmp.lt.s32.totalorder %s20, 1
      %s233 = scalar_select %p232, %s20, 1
      %p234 = scmp.lt.s32.totalorder %s231, 15
      %s235 = scalar_select %p234, %s231, 15
      %s236 = smul.addr %s233, 16
      %s237 = sadd.s32 %s235, %s236
      %s238 = smul.addr %s237, 4
      %s239 = scalar_lea.vmem %s0, %s238
      %s240 = smul.u32 16, %s21
      %s241 = smul.u32 16, %s21
      %p242 = scmp.lt.s32.totalorder %s20, 1
      %s243 = scalar_select %p242, %s20, 1
      %p244 = scmp.lt.s32.totalorder %s241, 15
      %s245 = scalar_select %p244, %s241, 15
      %s246 = smul.addr %s243, 16
      %s247 = sadd.s32 %s245, %s246
      %s248 = smul.addr %s247, 4
      %s249 = scalar_lea.vmem %s3, %s248
      %s250 = smul.u32 16, %s21
      %s251 = smul.u32 16, %s21
      %p252 = scmp.lt.s32.totalorder %s20, 1
      %s253 = scalar_select %p252, %s20, 1
      %p254 = scmp.lt.s32.totalorder %s251, 15
      %s255 = scalar_select %p254, %s251, 15
      %s256 = smul.addr %s253, 16
      %s257 = sadd.s32 %s255, %s256
      %s258 = smul.addr %s257, 4
      %s259 = scalar_lea.vmem %s4, %s258
      %s260 = smul.u32 16, %s21
      %v262 = vld [vmem:[%s239] sm:$0xf]
      %v263 = vld [vmem:[%s239 + $0x4] sm:$0xf]
      %v264 = vld [vmem:[%s239 + $0x8] sm:$0xf]
      %v265 = vld [vmem:[%s239 + $0xc] sm:$0xf]
      %v266 = vld [vmem:[%s239 + $0x10] sm:$0xf]
      %v267 = vld [vmem:[%s239 + $0x14] sm:$0xf]
      %v268 = vld [vmem:[%s239 + $0x18] sm:$0xf]
      %v269 = vld [vmem:[%s239 + $0x1c] sm:$0xf]
      %v270 = vld [vmem:[%s239 + $0x20] sm:$0xf]
      %v271 = vld [vmem:[%s239 + $0x24] sm:$0xf]
      %v272 = vld [vmem:[%s239 + $0x28] sm:$0xf]
      %v273 = vld [vmem:[%s239 + $0x2c] sm:$0xf]
      %v274 = vld [vmem:[%s239 + $0x30] sm:$0xf]
      %v275 = vld [vmem:[%s239 + $0x34] sm:$0xf]
      %v276 = vld [vmem:[%s239 + $0x38] sm:$0xf]
      %v277 = vld [vmem:[%s239 + $0x3c] sm:$0xf]
      %v278 = vld [vmem:[%s1] sm:$0xf]
      %v279 = vld [vmem:[%s1 + $0x4] sm:$0xf]
      %v280 = vld [vmem:[%s1 + $0x8] sm:$0xf]
      %v281 = vld [vmem:[%s1 + $0xc] sm:$0xf]
      %v282 = vld [vmem:[%s2] sm:$0x1]
      %v284 = vlaneseq
      %v285 = vshrl.u32 %v284, 7
      %v286 = vsub.s32 0, %v285
      %v287 = vrot.slane %v282, %v286
      %v305 = vunpack.c.l.b16 %v262
      %v306 = vunpack.c.l.b16 %v263
      %v307 = vunpack.c.l.b16 %v264
      %v308 = vunpack.c.l.b16 %v265
      %v309 = vunpack.c.l.b16 %v266
      %v310 = vunpack.c.l.b16 %v267
      %v311 = vunpack.c.l.b16 %v268
      %v312 = vunpack.c.l.b16 %v269
      %v313 = vunpack.c.l.b16 %v270
      %v314 = vunpack.c.l.b16 %v271
      %v315 = vunpack.c.l.b16 %v272
      %v316 = vunpack.c.l.b16 %v273
      %v317 = vunpack.c.l.b16 %v274
      %v318 = vunpack.c.l.b16 %v275
      %v319 = vunpack.c.l.b16 %v276
      %v320 = vunpack.c.l.b16 %v277
      %v321 = vpack.c.b16 %v306, %v305
      %v322 = vpack.c.b16 %v308, %v307
      %v323 = vpack.c.b16 %v310, %v309
      %v324 = vpack.c.b16 %v312, %v311
      %v325 = vpack.c.b16 %v314, %v313
      %v326 = vpack.c.b16 %v316, %v315
      %v327 = vpack.c.b16 %v318, %v317
      %v328 = vpack.c.b16 %v320, %v319
      %v333 = vunpack.c.l.b16 %v278
      %v334 = vunpack.c.l.b16 %v279
      %v335 = vunpack.c.l.b16 %v280
      %v336 = vunpack.c.l.b16 %v281
      %v337 = vpack.c.b16 %v334, %v333
      %v338 = vpack.c.b16 %v336, %v335
      %vm341 = vcmask 261120
      %v343 = vsel %vm341, %v321, 0
      %v346 = vsel %vm341, %v322, 0
      %v349 = vsel %vm341, %v323, 0
      %v352 = vsel %vm341, %v324, 0
      %v355 = vsel %vm341, %v325, 0
      %v358 = vsel %vm341, %v326, 0
      %v361 = vsel %vm341, %v327, 0
      %v364 = vsel %vm341, %v328, 0
      %366 = vmatprep.subr.bf16.mxu0 0
      %367 = vmatpush1.bf16.msra.mxu0 0
      %368 = vmatprep.subr.bf16.mxu0 0
      %369 = vmatpush1.bf16.msra.mxu0 0
      %370 = vmatprep.subr.bf16.mxu0 0
      %371 = vmatpush1.bf16.msra.mxu0 0
      %372 = vmatprep.subr.bf16.mxu0 0
      %373 = vmatpush1.bf16.msra.mxu0 0
      %374 = vmatprep.subr.bf16.mxu0 0
      %375 = vmatpush1.bf16.msra.mxu0 0
      %376 = vmatprep.subr.bf16.mxu0 0
      %377 = vmatpush1.bf16.msra.mxu0 0
      %378 = vmatprep.subr.bf16.mxu0 0
      %379 = vmatpush1.bf16.msra.mxu0 %v338
      %380 = vmatprep.subr.bf16.mxu0 0
      %381 = vmatpush1.bf16.msra.mxu0 %v337
      %382 = vmatprep.subr.bf16.mxu0 0
      %383 = vmatpush2.bf16.msra.mxu0 0
      %384 = vmatprep.subr.bf16.mxu0 0
      %385 = vmatpush2.bf16.msra.mxu0 0
      %386 = vmatprep.subr.bf16.mxu0 0
      %387 = vmatpush2.bf16.msra.mxu0 0
      %388 = vmatprep.subr.bf16.mxu0 0
      %389 = vmatpush2.bf16.msra.mxu0 0
      %390 = vmatprep.subr.bf16.mxu0 0
      %391 = vmatpush2.bf16.msra.mxu0 0
      %392 = vmatprep.subr.bf16.mxu0 0
      %393 = vmatpush2.bf16.msra.mxu0 0
      %394 = vmatprep.subr.bf16.mxu0 0
      %395 = vmatpush2.bf16.msra.mxu0 0
      %396 = vmatprep.subr.bf16.mxu0 0
      %397 = vmatpush2.bf16.msra.mxu0 0
      %398 = vmatprep.mubr.bf16.mxu0 0
      %399 = vmatmul.mubr.bf16.gmra.mxu0 %v343
      %v400 = vpop.f32.mrf.mxu0
      %v401 = vadd.f32 %v287, %v400
      %v402 = vpop.f32.mrf.mxu0
      %v403 = vpop.f32.mrf.mxu0
      %v404 = vadd.f32 %v287, %v403
      %v405 = vpop.f32.mrf.mxu0
      %406 = vmatprep.mubr.bf16.mxu0 0
      %407 = vmatmul.mubr.bf16.gmra.mxu0 %v346
      %v408 = vpop.f32.mrf.mxu0
      %v409 = vadd.f32 %v287, %v408
      %v410 = vpop.f32.mrf.mxu0
      %v411 = vpop.f32.mrf.mxu0
      %v412 = vadd.f32 %v287, %v411
      %v413 = vpop.f32.mrf.mxu0
      %414 = vmatprep.mubr.bf16.mxu0 0
      %415 = vmatmul.mubr.bf16.gmra.mxu0 %v349
      %v416 = vpop.f32.mrf.mxu0
      %v417 = vadd.f32 %v287, %v416
      %v418 = vpop.f32.mrf.mxu0
      %v419 = vpop.f32.mrf.mxu0
      %v420 = vadd.f32 %v287, %v419
      %v421 = vpop.f32.mrf.mxu0
      %422 = vmatprep.mubr.bf16.mxu0 0
      %423 = vmatmul.mubr.bf16.gmra.mxu0 %v352
      %v424 = vpop.f32.mrf.mxu0
      %v425 = vadd.f32 %v287, %v424
      %v426 = vpop.f32.mrf.mxu0
      %v427 = vpop.f32.mrf.mxu0
      %v428 = vadd.f32 %v287, %v427
      %v429 = vpop.f32.mrf.mxu0
      %430 = vmatprep.mubr.bf16.mxu0 0
      %431 = vmatmul.mubr.bf16.gmra.mxu0 %v355
      %v432 = vpop.f32.mrf.mxu0
      %v433 = vadd.f32 %v287, %v432
      %v434 = vpop.f32.mrf.mxu0
      %v435 = vpop.f32.mrf.mxu0
      %v436 = vadd.f32 %v287, %v435
      %v437 = vpop.f32.mrf.mxu0
      %438 = vmatprep.mubr.bf16.mxu0 0
      %439 = vmatmul.mubr.bf16.gmra.mxu0 %v358
      %v440 = vpop.f32.mrf.mxu0
      %v441 = vadd.f32 %v287, %v440
      %v442 = vpop.f32.mrf.mxu0
      %v443 = vpop.f32.mrf.mxu0
      %v444 = vadd.f32 %v287, %v443
      %v445 = vpop.f32.mrf.mxu0
      %446 = vmatprep.mubr.bf16.mxu0 0
      %447 = vmatmul.mubr.bf16.gmra.mxu0 %v361
      %v448 = vpop.f32.mrf.mxu0
      %v449 = vadd.f32 %v287, %v448
      %v450 = vpop.f32.mrf.mxu0
      %v451 = vpop.f32.mrf.mxu0
      %v452 = vadd.f32 %v287, %v451
      %v453 = vpop.f32.mrf.mxu0
      %454 = vmatprep.mubr.bf16.mxu0 0
      %455 = vmatmul.mubr.bf16.gmra.mxu0 %v364
      %v456 = vpop.f32.mrf.mxu0
      %v457 = vadd.f32 %v287, %v456
      %v458 = vpop.f32.mrf.mxu0
      %v459 = vpop.f32.mrf.mxu0
      %v460 = vadd.f32 %v287, %v459
      %v461 = vpop.f32.mrf.mxu0
      %462 = vdwg.mxu0
      %v463 = vpack.c.bf16 %v404, %v401
      %v464 = vpack.c.bf16 %v412, %v409
      %v465 = vpack.c.bf16 %v420, %v417
      %v466 = vpack.c.bf16 %v428, %v425
      %v467 = vpack.c.bf16 %v436, %v433
      %v468 = vpack.c.bf16 %v444, %v441
      %v469 = vpack.c.bf16 %v452, %v449
      %v470 = vpack.c.bf16 %v460, %v457
      %v479 = vunpack.c.l.b16 %v463
      %v480 = vunpack.c.h.b16 %v463
      %v481 = vunpack.c.l.b16 %v464
      %v482 = vunpack.c.h.b16 %v464
      %v483 = vunpack.c.l.b16 %v465
      %v484 = vunpack.c.h.b16 %v465
      %v485 = vunpack.c.l.b16 %v466
      %v486 = vunpack.c.h.b16 %v466
      %v487 = vunpack.c.l.b16 %v467
      %v488 = vunpack.c.h.b16 %v467
      %v489 = vunpack.c.l.b16 %v468
      %v490 = vunpack.c.h.b16 %v468
      %v491 = vunpack.c.l.b16 %v469
      %v492 = vunpack.c.h.b16 %v469
      %v493 = vunpack.c.l.b16 %v470
      %v494 = vunpack.c.h.b16 %v470
      %v495 = vpack.c.b16 %v479, %v479
      %v496 = vpack.c.b16 %v480, %v480
      %v497 = vpack.c.b16 %v481, %v481
      %v498 = vpack.c.b16 %v482, %v482
      %v499 = vpack.c.b16 %v483, %v483
      %v500 = vpack.c.b16 %v484, %v484
      %v501 = vpack.c.b16 %v485, %v485
      %v502 = vpack.c.b16 %v486, %v486
      %v503 = vpack.c.b16 %v487, %v487
      %v504 = vpack.c.b16 %v488, %v488
      %v505 = vpack.c.b16 %v489, %v489
      %v506 = vpack.c.b16 %v490, %v490
      %v507 = vpack.c.b16 %v491, %v491
      %v508 = vpack.c.b16 %v492, %v492
      %v509 = vpack.c.b16 %v493, %v493
      %v510 = vpack.c.b16 %v494, %v494
      %vm527 = vcmask 257024
      %528 = vst.msk [vmem:[%s249] sm:$0xf] %vm527, %v495
      %529 = vst.msk [vmem:[%s249 + $0x4] sm:$0xf] %vm527, %v496
      %530 = vst.msk [vmem:[%s249 + $0x8] sm:$0xf] %vm527, %v497
      %531 = vst.msk [vmem:[%s249 + $0xc] sm:$0xf] %vm527, %v498
      %532 = vst.msk [vmem:[%s249 + $0x10] sm:$0xf] %vm527, %v499
      %533 = vst.msk [vmem:[%s249 + $0x14] sm:$0xf] %vm527, %v500
      %534 = vst.msk [vmem:[%s249 + $0x18] sm:$0xf] %vm527, %v501
      %535 = vst.msk [vmem:[%s249 + $0x1c] sm:$0xf] %vm527, %v502
      %536 = vst.msk [vmem:[%s249 + $0x20] sm:$0xf] %vm527, %v503
      %537 = vst.msk [vmem:[%s249 + $0x24] sm:$0xf] %vm527, %v504
      %538 = vst.msk [vmem:[%s249 + $0x28] sm:$0xf] %vm527, %v505
      %539 = vst.msk [vmem:[%s249 + $0x2c] sm:$0xf] %vm527, %v506
      %540 = vst.msk [vmem:[%s249 + $0x30] sm:$0xf] %vm527, %v507
      %541 = vst.msk [vmem:[%s249 + $0x34] sm:$0xf] %vm527, %v508
      %542 = vst.msk [vmem:[%s249 + $0x38] sm:$0xf] %vm527, %v509
      %543 = vst.msk [vmem:[%s249 + $0x3c] sm:$0xf] %vm527, %v510
      %544 = vrot.lane.b32.xlu0 %v495, 96
      %v545 = vpop.permute.xlu0 %544
      %546 = vrot.lane.b32.xlu0 %v496, 96
      %v547 = vpop.permute.xlu0 %546
      %548 = vrot.lane.b32.xlu0 %v497, 96
      %v549 = vpop.permute.xlu0 %548
      %550 = vrot.lane.b32.xlu0 %v498, 96
      %v551 = vpop.permute.xlu0 %550
      %552 = vrot.lane.b32.xlu0 %v499, 96
      %v553 = vpop.permute.xlu0 %552
      %554 = vrot.lane.b32.xlu0 %v500, 96
      %v555 = vpop.permute.xlu0 %554
      %556 = vrot.lane.b32.xlu0 %v501, 96
      %v557 = vpop.permute.xlu0 %556
      %558 = vrot.lane.b32.xlu0 %v502, 96
      %v559 = vpop.permute.xlu0 %558
      %560 = vrot.lane.b32.xlu0 %v503, 96
      %v561 = vpop.permute.xlu0 %560
      %562 = vrot.lane.b32.xlu0 %v504, 96
      %v563 = vpop.permute.xlu0 %562
      %564 = vrot.lane.b32.xlu0 %v505, 96
      %v565 = vpop.permute.xlu0 %564
      %566 = vrot.lane.b32.xlu0 %v506, 96
      %v567 = vpop.permute.xlu0 %566
      %568 = vrot.lane.b32.xlu0 %v507, 96
      %v569 = vpop.permute.xlu0 %568
      %570 = vrot.lane.b32.xlu0 %v508, 96
      %v571 = vpop.permute.xlu0 %570
      %572 = vrot.lane.b32.xlu0 %v509, 96
      %v573 = vpop.permute.xlu0 %572
      %574 = vrot.lane.b32.xlu0 %v510, 96
      %v575 = vpop.permute.xlu0 %574
      %592 = vst.msk [vmem:[%s259] sm:$0xf] %vm527, %v545
      %593 = vst.msk [vmem:[%s259 + $0x4] sm:$0xf] %vm527, %v547
      %594 = vst.msk [vmem:[%s259 + $0x8] sm:$0xf] %vm527, %v549
      %595 = vst.msk [vmem:[%s259 + $0xc] sm:$0xf] %vm527, %v551
      %596 = vst.msk [vmem:[%s259 + $0x10] sm:$0xf] %vm527, %v553
      %597 = vst.msk [vmem:[%s259 + $0x14] sm:$0xf] %vm527, %v555
      %598 = vst.msk [vmem:[%s259 + $0x18] sm:$0xf] %vm527, %v557
      %599 = vst.msk [vmem:[%s259 + $0x1c] sm:$0xf] %vm527, %v559
      %600 = vst.msk [vmem:[%s259 + $0x20] sm:$0xf] %vm527, %v561
      %601 = vst.msk [vmem:[%s259 + $0x24] sm:$0xf] %vm527, %v563
      %602 = vst.msk [vmem:[%s259 + $0x28] sm:$0xf] %vm527, %v565
      %603 = vst.msk [vmem:[%s259 + $0x2c] sm:$0xf] %vm527, %v567
      %604 = vst.msk [vmem:[%s259 + $0x30] sm:$0xf] %vm527, %v569
      %605 = vst.msk [vmem:[%s259 + $0x34] sm:$0xf] %vm527, %v571
      %606 = vst.msk [vmem:[%s259 + $0x38] sm:$0xf] %vm527, %v573
      %607 = vst.msk [vmem:[%s259 + $0x3c] sm:$0xf] %vm527, %v575
      %s608 = smul.u32 16, %s21
      %p609 = scmp.lt.s32.totalorder %s20, 1
      %s610 = scalar_select %p609, %s20, 1
      %p611 = scmp.lt.s32.totalorder %s608, 15
      %s612 = scalar_select %p611, %s608, 15
      %s613 = smul.addr %s610, 16
      %s614 = sadd.s32 %s612, %s613
      %s615 = smul.addr %s614, 4
      %s616 = scalar_lea.vmem %s3, %s615
      %s617 = smul.u32 16, %s21
      %p618 = scmp.lt.s32.totalorder %s20, 1
      %s619 = scalar_select %p618, %s20, 1
      %p620 = scmp.lt.s32.totalorder %s617, 15
      %s621 = scalar_select %p620, %s617, 15
      %s622 = smul.addr %s619, 16
      %s623 = sadd.s32 %s621, %s622
      %s624 = smul.addr %s623, 4
      %s625 = scalar_lea.vmem %s4, %s624
      // Predicated region
      $region33: #{tpu_custom_call.1} parent=31 // pred_check
        %p626 = pneg %p118
      $region34: #{tpu_custom_call.1} parent=31 // pred_check_branch
        %628 = sbr.rel (%p626) target = $region36
      $region35: #{tpu_custom_call.1} parent=31 // pred_region
        %s629 = smul.u32 16, %s21
      $region36: #{tpu_custom_call.1} parent=31 // pred_fallthru
        _
      // Predicated region
      $region37: #{tpu_custom_call.1} parent=31 // pred_check
        %p630 = pneg %p146
      $region38: #{tpu_custom_call.1} parent=31 // pred_check_branch
        %632 = sbr.rel (%p630) target = $region40
      $region39: #{tpu_custom_call.1} parent=31 // pred_region
        %s633 = smul.u32 16, %s21
      $region40: #{tpu_custom_call.1} parent=31 // pred_fallthru
        _
    $region32: #{tpu_custom_call.1} parent=5 // pred_fallthru
      _
    %p634 = scmp.le.s32.totalorder 2, %s11
    // Predicated region
    $region41: #{tpu_custom_call.1} parent=5 // pred_check
      %p635 = pneg %p634
    $region42: #{tpu_custom_call.1} parent=5 // pred_check_branch
      %637 = sbr.rel (%p635) target = $region44
    $region43: #{tpu_custom_call.1} parent=5 // pred_region
      %s638 = ssub.s32 %s11, 2
      // Predicated region
      $region45: #{tpu_custom_call.1} parent=43 // pred_check
        %p639 = pneg %p124
      $region46: #{tpu_custom_call.1} parent=43 // pred_check_branch
        %641 = sbr.rel (%p639) target = $region48
      $region47: #{tpu_custom_call.1} parent=43 // pred_region
        %s642 = smul.u32 16, %s23
        %p643 = scmp.lt.s32.totalorder %s22, 1
        %s644 = scalar_select %p643, %s22, 1
        %p645 = scmp.lt.s32.totalorder %s642, 15
        %s646 = scalar_select %p645, %s642, 15
        %s647 = smul.addr %s644, 16
        %s648 = sadd.s32 %s646, %s647
        %s649 = smul.addr %s648, 4
        %s650 = scalar_lea.vmem %s3, %s649
      $region48: #{tpu_custom_call.1} parent=43 // pred_fallthru
        _
      // Predicated region
      $region49: #{tpu_custom_call.1} parent=43 // pred_check
        %p651 = pneg %p152
      $region50: #{tpu_custom_call.1} parent=43 // pred_check_branch
        %653 = sbr.rel (%p651) target = $region52
      $region51: #{tpu_custom_call.1} parent=43 // pred_region
        %s654 = smul.u32 16, %s23
        %p655 = scmp.lt.s32.totalorder %s22, 1
        %s656 = scalar_select %p655, %s22, 1
        %p657 = scmp.lt.s32.totalorder %s654, 15
        %s658 = scalar_select %p657, %s654, 15
        %s659 = smul.addr %s656, 16
        %s660 = sadd.s32 %s658, %s659
        %s661 = smul.addr %s660, 4
        %s662 = scalar_lea.vmem %s4, %s661
      $region52: #{tpu_custom_call.1} parent=43 // pred_fallthru
        _
    $region44: #{tpu_custom_call.1} parent=5 // pred_fallthru
      _
  $region6: #{tpu_custom_call.1} parent=0 // loop_footer
    %s15 = sadd.s32 1, %s11
  $region7: #{tpu_custom_call.1} parent=0 // loop_footer_branch
    %10 = sbr.rel target = $region3
  $region8: #{tpu_custom_call.1} parent=0 // loop_exit
    _

// kernel: tpu_custom_call.1
$region0: #{tpu_custom_call.1}
  #allocation0 [shape = 'u32[]', space=smem, size = 0x4, offset = 0x4, fixed_abs, tag = 'smem constant byte address 0x4 - core index']
  #allocation1 [shape = 'u32[144,128]{1,0:T(1,128)}', space=vmem, size = 0x12000, scoped, tag = 'internal scratch']
  %s0 = inlined_call_operand.vmem [shape: bf16[2,128,32], index: 0, kind: input, shape index: {}]
  %s1 = inlined_call_operand.vmem [shape: bf16[32,64], index: 1, kind: input, shape index: {}]
  %s2 = inlined_call_operand.vmem [shape: f32[1,64], index: 2, kind: input, shape index: {}]
  %s3 = inlined_call_operand.vmem [shape: bf16[2,128,32], index: 3, kind: output, shape index: {0}]
  %s4 = inlined_call_operand.vmem [shape: bf16[2,128,32], index: 4, kind: output, shape index: {1}]
  %5 = xla_tuple %s3, %s4
  %s6 = sld [smem:[#allocation0]]
  $region53: #{tpu_custom_call.1} parent=0
    _
  %s8 = ssub.s32 1, %s6
  %s9 = scalar_select 0, %s8, %s6
  loop: start=0, step=1, limit=4
  $region2: #{tpu_custom_call.1} parent=0 // loop_pre_header
    _
  $region3: #{tpu_custom_call.1} parent=0 // loop_header
    %s11 = sphi 0, %s15
    %p12 = scmp.ge.s32.totalorder %s11, 4
    %s18 = sphi 0, %s30
    %s19 = sphi 0, %s26
    %s20 = sphi 0, %s18
    %s21 = sphi 0, %s19
    %s22 = sphi 0, %s20
    %s23 = sphi 0, %s21
    %s35 = sphi 0, %s37
    %s38 = sphi 0, %s35
    %s39 = sphi 0, %s38
    %s55 = sphi 0, %s39
    %s59 = sphi 0, %s59
    %s61 = sphi 0, %s59
    %s62 = sphi 0, %s61
    %s76 = sphi 0, %s62
    %s80 = sphi 0, %s80
    %s82 = sphi 0, %s80
    %s83 = sphi 0, %s82
    %s97 = sphi 0, %s83
    %s105 = sphi 0, %s107
    %s108 = sphi 0, %s105
    %s109 = sphi 0, %s108
    %s125 = sphi 0, %s109
    %s133 = sphi 0, %s135
    %s136 = sphi 0, %s133
    %s137 = sphi 0, %s136
    %s153 = sphi 0, %s137
  $region4: #{tpu_custom_call.1} parent=0 // loop_header_branch
    %14 = sbr.rel (%p12) target = $region8
  $region5: #{tpu_custom_call.1} parent=0 // loop_body
    %s16 = ssub.s32 %s11, 1
    %s17 = ssub.s32 %s11, 2
    %s24 = sadd.s32 1, %s19
    %p25 = scmp.ge.s32.totalorder %s24, 1
    %s26 = scalar_select %p25, 0, %s24
    %s27 = sadd.s32 1, %s18
    %s28 = scalar_select %p25, %s27, %s18
    %p29 = scmp.ge.s32.totalorder %s28, 2
    %s30 = scalar_select %p29, 0, %s28
    %s31 = ssub.s32 %s18, %s30
    %s32 = ssub.s32 %s19, %s26
    %s33 = sor.u32 %s31, %s32
    %p34 = scmp.eq.s32.totalorder %s33, 0
    %s36 = sadd.s32 %s35, 1
    %s37 = scalar_select %p34, %s35, %s36
    %p40 = pneg %p34
    %p41 = scmp.eq.s32.totalorder %s11, 1
    %p42 = por %p40, %p41
    %p43 = scmp.ne.s32.totalorder %s35, %s38
    %p44 = scmp.eq.s32.totalorder %s11, 0
    %p45 = por %p43, %p44
    %p46 = scmp.ne.s32.totalorder %s35, %s38
    %p47 = scmp.eq.s32.totalorder %s16, 1
    %p48 = por %p46, %p47
    %p49 = scmp.ne.s32.totalorder %s38, %s39
    %p50 = scmp.eq.s32.totalorder %s16, 0
    %p51 = por %p49, %p50
    %p52 = scmp.ne.s32.totalorder %s38, %s39
    %p53 = scmp.eq.s32.totalorder %s17, 1
    %p54 = por %p52, %p53
    %p56 = scmp.ne.s32.totalorder %s39, %s55
    %p57 = scmp.eq.s32.totalorder %s17, 0
    %p58 = por %p56, %p57
    %s60 = sadd.s32 %s59, 1
    %p63 = scmp.eq.s32.totalorder %s11, 1
    %p64 = scmp.ne.s32.totalorder %s59, %s61
    %p65 = scmp.eq.s32.totalorder %s11, 0
    %p66 = por %p64, %p65
    %p67 = scmp.ne.s32.totalorder %s59, %s61
    %p68 = scmp.eq.s32.totalorder %s16, 1
    %p69 = por %p67, %p68
    %p70 = scmp.ne.s32.totalorder %s61, %s62
    %p71 = scmp.eq.s32.totalorder %s16, 0
    %p72 = por %p70, %p71
    %p73 = scmp.ne.s32.totalorder %s61, %s62
    %p74 = scmp.eq.s32.totalorder %s17, 1
    %p75 = por %p73, %p74
    %p77 = scmp.ne.s32.totalorder %s62, %s76
    %p78 = scmp.eq.s32.totalorder %s17, 0
    %p79 = por %p77, %p78
    %s81 = sadd.s32 %s80, 1
    %p84 = scmp.eq.s32.totalorder %s11, 1
    %p85 = scmp.ne.s32.totalorder %s80, %s82
    %p86 = scmp.eq.s32.totalorder %s11, 0
    %p87 = por %p85, %p86
    %p88 = scmp.ne.s32.totalorder %s80, %s82
    %p89 = scmp.eq.s32.totalorder %s16, 1
    %p90 = por %p88, %p89
    %p91 = scmp.ne.s32.totalorder %s82, %s83
    %p92 = scmp.eq.s32.totalorder %s16, 0
    %p93 = por %p91, %p92
    %p94 = scmp.ne.s32.totalorder %s82, %s83
    %p95 = scmp.eq.s32.totalorder %s17, 1
    %p96 = por %p94, %p95
    %p98 = scmp.ne.s32.totalorder %s83, %s97
    %p99 = scmp.eq.s32.totalorder %s17, 0
    %p100 = por %p98, %p99
    %s101 = ssub.s32 %s18, %s30
    %s102 = ssub.s32 %s19, %s26
    %s103 = sor.u32 %s101, %s102
    %p104 = scmp.eq.s32.totalorder %s103, 0
    %s106 = sadd.s32 %s105, 1
    %s107 = scalar_select %p104, %s105, %s106
    %p110 = pneg %p104
    %p111 = scmp.eq.s32.totalorder %s11, 1
    %p112 = por %p110, %p111
    %p113 = scmp.ne.s32.totalorder %s105, %s108
    %p114 = scmp.eq.s32.totalorder %s11, 0
    %p115 = por %p113, %p114
    %p116 = scmp.ne.s32.totalorder %s105, %s108
    %p117 = scmp.eq.s32.totalorder %s16, 1
    %p118 = por %p116, %p117
    %p119 = scmp.ne.s32.totalorder %s108, %s109
    %p120 = scmp.eq.s32.totalorder %s16, 0
    %p121 = por %p119, %p120
    %p122 = scmp.ne.s32.totalorder %s108, %s109
    %p123 = scmp.eq.s32.totalorder %s17, 1
    %p124 = por %p122, %p123
    %p126 = scmp.ne.s32.totalorder %s109, %s125
    %p127 = scmp.eq.s32.totalorder %s17, 0
    %p128 = por %p126, %p127
    %s129 = ssub.s32 %s18, %s30
    %s130 = ssub.s32 %s19, %s26
    %s131 = sor.u32 %s129, %s130
    %p132 = scmp.eq.s32.totalorder %s131, 0
    %s134 = sadd.s32 %s133, 1
    %s135 = scalar_select %p132, %s133, %s134
    %p138 = pneg %p132
    %p139 = scmp.eq.s32.totalorder %s11, 1
    %p140 = por %p138, %p139
    %p141 = scmp.ne.s32.totalorder %s133, %s136
    %p142 = scmp.eq.s32.totalorder %s11, 0
    %p143 = por %p141, %p142
    %p144 = scmp.ne.s32.totalorder %s133, %s136
    %p145 = scmp.eq.s32.totalorder %s16, 1
    %p146 = por %p144, %p145
    %p147 = scmp.ne.s32.totalorder %s136, %s137
    %p148 = scmp.eq.s32.totalorder %s16, 0
    %p149 = por %p147, %p148
    %p150 = scmp.ne.s32.totalorder %s136, %s137
    %p151 = scmp.eq.s32.totalorder %s17, 1
    %p152 = por %p150, %p151
    %p154 = scmp.ne.s32.totalorder %s137, %s153
    %p155 = scmp.eq.s32.totalorder %s17, 0
    %p156 = por %p154, %p155
    %p157 = scmp.le.s32.totalorder 1, %s11
    %p158 = scmp.lt.s32.totalorder %s11, 3
    %p159 = pnand %p157, %p158
    %p160 = pneg %p159
    // Predicated region
    $region9: #{tpu_custom_call.1} parent=5 // pred_check
      _
    $region10: #{tpu_custom_call.1} parent=5 // pred_check_branch
      %162 = sbr.rel (%p159) target = $region12
    $region11: #{tpu_custom_call.1} parent=5 // pred_region
      %s163 = ssub.s32 %s11, 1
      // Predicated region
      $region13: #{tpu_custom_call.1} parent=11 // pred_check
        %p164 = pneg %p72
      $region14: #{tpu_custom_call.1} parent=11 // pred_check_branch
        %166 = sbr.rel (%p164) target = $region16
      $region15: #{tpu_custom_call.1} parent=11 // pred_region
        _
      $region16: #{tpu_custom_call.1} parent=11 // pred_fallthru
        _
      // Predicated region
      $region17: #{tpu_custom_call.1} parent=11 // pred_check
        %p167 = pneg %p93
      $region18: #{tpu_custom_call.1} parent=11 // pred_check_branch
        %169 = sbr.rel (%p167) target = $region20
      $region19: #{tpu_custom_call.1} parent=11 // pred_region
        _
      $region20: #{tpu_custom_call.1} parent=11 // pred_fallthru
        _
    $region12: #{tpu_custom_call.1} parent=5 // pred_fallthru
      _
    %p170 = scmp.lt.s32.totalorder %s11, 2
    // Predicated region
    $region21: #{tpu_custom_call.1} parent=5 // pred_check
      %p171 = pneg %p170
    $region22: #{tpu_custom_call.1} parent=5 // pred_check_branch
      %173 = sbr.rel (%p171) target = $region24
    $region23: #{tpu_custom_call.1} parent=5 // pred_region
      // Predicated region
      $region25: #{tpu_custom_call.1} parent=23 // pred_check
        %p174 = pneg %p45
      $region26: #{tpu_custom_call.1} parent=23 // pred_check_branch
        %176 = sbr.rel (%p174) target = $region28
      $region27: #{tpu_custom_call.1} parent=23 // pred_region
        %s177 = smul.u32 16, %s19
        %p178 = scmp.lt.s32.totalorder %s18, 1
        %s179 = scalar_select %p178, %s18, 1
        %p180 = scmp.lt.s32.totalorder %s177, 15
        %s181 = scalar_select %p180, %s177, 15
        %s182 = smul.addr %s179, 16
        %s183 = sadd.s32 %s181, %s182
        %s184 = smul.addr %s183, 4
        %s185 = scalar_lea.vmem %s0, %s184
        %s186 = smul.u32 16, %s19
      $region28: #{tpu_custom_call.1} parent=23 // pred_fallthru
        _
    $region24: #{tpu_custom_call.1} parent=5 // pred_fallthru
      _
    %p187 = scmp.le.s32.totalorder 1, %s11
    %p188 = scmp.lt.s32.totalorder %s11, 3
    %p189 = pnand %p187, %p188
    %p190 = pneg %p189
    // Predicated region
    $region29: #{tpu_custom_call.1} parent=5 // pred_check
      _
    $region30: #{tpu_custom_call.1} parent=5 // pred_check_branch
      %192 = sbr.rel (%p189) target = $region32
    $region31: #{tpu_custom_call.1} parent=5 // pred_region
      %s193 = ssub.s32 %s11, 1
      %s194 = smul.u32 16, %s21
      %p195 = scmp.lt.s32.totalorder %s20, 1
      %s196 = scalar_select %p195, %s20, 1
      %p197 = scmp.lt.s32.totalorder %s194, 15
      %s198 = scalar_select %p197, %s194, 15
      %s199 = smul.addr %s196, 16
      %s200 = sadd.s32 %s198, %s199
      %s201 = smul.addr %s200, 4
      %s202 = scalar_lea.vmem %s0, %s201
      %p203 = pneg %p51
      %p204 = pneg %p48
      %p205 = pneg %p72
      %p206 = pneg %p69
      %p207 = pneg %p93
      %p208 = pneg %p90
      %p209 = pneg %p121
      %p210 = pneg %p118
      %s211 = smul.u32 16, %s21
      %p212 = scmp.lt.s32.totalorder %s20, 1
      %s213 = scalar_select %p212, %s20, 1
      %p214 = scmp.lt.s32.totalorder %s211, 15
      %s215 = scalar_select %p214, %s211, 15
      %s216 = smul.addr %s213, 16
      %s217 = sadd.s32 %s215, %s216
      %s218 = smul.addr %s217, 4
      %s219 = scalar_lea.vmem %s3, %s218
      %p220 = pneg %p149
      %p221 = pneg %p146
      %s222 = smul.u32 16, %s21
      %p223 = scmp.lt.s32.totalorder %s20, 1
      %s224 = scalar_select %p223, %s20, 1
      %p225 = scmp.lt.s32.totalorder %s222, 15
      %s226 = scalar_select %p225, %s222, 15
      %s227 = smul.addr %s224, 16
      %s228 = sadd.s32 %s226, %s227
      %s229 = smul.addr %s228, 4
      %s230 = scalar_lea.vmem %s4, %s229
      %s231 = smul.u32 16, %s21
      %p232 = scmp.lt.s32.totalorder %s20, 1
      %s233 = scalar_select %p232, %s20, 1
      %p234 = scmp.lt.s32.totalorder %s231, 15
      %s235 = scalar_select %p234, %s231, 15
      %s236 = smul.addr %s233, 16
      %s237 = sadd.s32 %s235, %s236
      %s238 = smul.addr %s237, 4
      %s239 = scalar_lea.vmem %s0, %s238
      %s240 = smul.u32 16, %s21
      %s241 = smul.u32 16, %s21
      %p242 = scmp.lt.s32.totalorder %s20, 1
      %s243 = scalar_select %p242, %s20, 1
      %p244 = scmp.lt.s32.totalorder %s241, 15
      %s245 = scalar_select %p244, %s241, 15
      %s246 = smul.addr %s243, 16
      %s247 = sadd.s32 %s245, %s246
      %s248 = smul.addr %s247, 4
      %s249 = scalar_lea.vmem %s3, %s248
      %s250 = smul.u32 16, %s21
      %s251 = smul.u32 16, %s21
      %p252 = scmp.lt.s32.totalorder %s20, 1
      %s253 = scalar_select %p252, %s20, 1
      %p254 = scmp.lt.s32.totalorder %s251, 15
      %s255 = scalar_select %p254, %s251, 15
      %s256 = smul.addr %s253, 16
      %s257 = sadd.s32 %s255, %s256
      %s258 = smul.addr %s257, 4
      %s259 = scalar_lea.vmem %s4, %s258
      %s260 = smul.u32 16, %s21
      %v262 = vld [vmem:[%s239] sm:$0xf]
      %v263 = vld [vmem:[%s239 + $0x4] sm:$0xf]
      %v264 = vld [vmem:[%s239 + $0x8] sm:$0xf]
      %v265 = vld [vmem:[%s239 + $0xc] sm:$0xf]
      %v266 = vld [vmem:[%s239 + $0x10] sm:$0xf]
      %v267 = vld [vmem:[%s239 + $0x14] sm:$0xf]
      %v268 = vld [vmem:[%s239 + $0x18] sm:$0xf]
      %v269 = vld [vmem:[%s239 + $0x1c] sm:$0xf]
      %v270 = vld [vmem:[%s239 + $0x20] sm:$0xf]
      %v271 = vld [vmem:[%s239 + $0x24] sm:$0xf]
      %v272 = vld [vmem:[%s239 + $0x28] sm:$0xf]
      %v273 = vld [vmem:[%s239 + $0x2c] sm:$0xf]
      %v274 = vld [vmem:[%s239 + $0x30] sm:$0xf]
      %v275 = vld [vmem:[%s239 + $0x34] sm:$0xf]
      %v276 = vld [vmem:[%s239 + $0x38] sm:$0xf]
      %v277 = vld [vmem:[%s239 + $0x3c] sm:$0xf]
      %v278 = vld [vmem:[%s1] sm:$0xf]
      %v279 = vld [vmem:[%s1 + $0x4] sm:$0xf]
      %v280 = vld [vmem:[%s1 + $0x8] sm:$0xf]
      %v281 = vld [vmem:[%s1 + $0xc] sm:$0xf]
      %v282 = vld [vmem:[%s2] sm:$0x1]
      %v284 = vlaneseq
      %v285 = vshrl.u32 %v284, 7
      %v286 = vsub.s32 0, %v285
      %v287 = vrot.slane %v282, %v286
      %v305 = vunpack.c.l.b16 %v262
      %v306 = vunpack.c.l.b16 %v263
      %v307 = vunpack.c.l.b16 %v264
      %v308 = vunpack.c.l.b16 %v265
      %v309 = vunpack.c.l.b16 %v266
      %v310 = vunpack.c.l.b16 %v267
      %v311 = vunpack.c.l.b16 %v268
      %v312 = vunpack.c.l.b16 %v269
      %v313 = vunpack.c.l.b16 %v270
      %v314 = vunpack.c.l.b16 %v271
      %v315 = vunpack.c.l.b16 %v272
      %v316 = vunpack.c.l.b16 %v273
      %v317 = vunpack.c.l.b16 %v274
      %v318 = vunpack.c.l.b16 %v275
      %v319 = vunpack.c.l.b16 %v276
      %v320 = vunpack.c.l.b16 %v277
      %v321 = vpack.c.b16 %v306, %v305
      %v322 = vpack.c.b16 %v308, %v307
      %v323 = vpack.c.b16 %v310, %v309
      %v324 = vpack.c.b16 %v312, %v311
      %v325 = vpack.c.b16 %v314, %v313
      %v326 = vpack.c.b16 %v316, %v315
      %v327 = vpack.c.b16 %v318, %v317
      %v328 = vpack.c.b16 %v320, %v319
      %v333 = vunpack.c.l.b16 %v278
      %v334 = vunpack.c.l.b16 %v279
      %v335 = vunpack.c.l.b16 %v280
      %v336 = vunpack.c.l.b16 %v281
      %v337 = vpack.c.b16 %v334, %v333
      %v338 = vpack.c.b16 %v336, %v335
      %vm341 = vcmask 261120
      %v343 = vsel %vm341, %v321, 0
      %v346 = vsel %vm341, %v322, 0
      %v349 = vsel %vm341, %v323, 0
      %v352 = vsel %vm341, %v324, 0
      %v355 = vsel %vm341, %v325, 0
      %v358 = vsel %vm341, %v326, 0
      %v361 = vsel %vm341, %v327, 0
      %v364 = vsel %vm341, %v328, 0
      %366 = vmatprep.subr.bf16.mxu0 0
      %367 = vmatpush1.bf16.msra.mxu0 0
      %368 = vmatprep.subr.bf16.mxu0 0
      %369 = vmatpush1.bf16.msra.mxu0 0
      %370 = vmatprep.subr.bf16.mxu0 0
      %371 = vmatpush1.bf16.msra.mxu0 0
      %372 = vmatprep.subr.bf16.mxu0 0
      %373 = vmatpush1.bf16.msra.mxu0 0
      %374 = vmatprep.subr.bf16.mxu0 0
      %375 = vmatpush1.bf16.msra.mxu0 0
      %376 = vmatprep.subr.bf16.mxu0 0
      %377 = vmatpush1.bf16.msra.mxu0 0
      %378 = vmatprep.subr.bf16.mxu0 0
      %379 = vmatpush1.bf16.msra.mxu0 %v338
      %380 = vmatprep.subr.bf16.mxu0 0
      %381 = vmatpush1.bf16.msra.mxu0 %v337
      %382 = vmatprep.subr.bf16.mxu0 0
      %383 = vmatpush2.bf16.msra.mxu0 0
      %384 = vmatprep.subr.bf16.mxu0 0
      %385 = vmatpush2.bf16.msra.mxu0 0
      %386 = vmatprep.subr.bf16.mxu0 0
      %387 = vmatpush2.bf16.msra.mxu0 0
      %388 = vmatprep.subr.bf16.mxu0 0
      %389 = vmatpush2.bf16.msra.mxu0 0
      %390 = vmatprep.subr.bf16.mxu0 0
      %391 = vmatpush2.bf16.msra.mxu0 0
      %392 = vmatprep.subr.bf16.mxu0 0
      %393 = vmatpush2.bf16.msra.mxu0 0
      %394 = vmatprep.subr.bf16.mxu0 0
      %395 = vmatpush2.bf16.msra.mxu0 0
      %396 = vmatprep.subr.bf16.mxu0 0
      %397 = vmatpush2.bf16.msra.mxu0 0
      %398 = vmatprep.mubr.bf16.mxu0 0
      %399 = vmatmul.mubr.bf16.gmra.mxu0 %v343
      %v400 = vpop.f32.mrf.mxu0
      %v401 = vadd.f32 %v287, %v400
      %v402 = vpop.f32.mrf.mxu0
      %v403 = vpop.f32.mrf.mxu0
      %v404 = vadd.f32 %v287, %v403
      %v405 = vpop.f32.mrf.mxu0
      %406 = vmatprep.mubr.bf16.mxu0 0
      %407 = vmatmul.mubr.bf16.gmra.mxu0 %v346
      %v408 = vpop.f32.mrf.mxu0
      %v409 = vadd.f32 %v287, %v408
      %v410 = vpop.f32.mrf.mxu0
      %v411 = vpop.f32.mrf.mxu0
      %v412 = vadd.f32 %v287, %v411
      %v413 = vpop.f32.mrf.mxu0
      %414 = vmatprep.mubr.bf16.mxu0 0
      %415 = vmatmul.mubr.bf16.gmra.mxu0 %v349
      %v416 = vpop.f32.mrf.mxu0
      %v417 = vadd.f32 %v287, %v416
      %v418 = vpop.f32.mrf.mxu0
      %v419 = vpop.f32.mrf.mxu0
      %v420 = vadd.f32 %v287, %v419
      %v421 = vpop.f32.mrf.mxu0
      %422 = vmatprep.mubr.bf16.mxu0 0
      %423 = vmatmul.mubr.bf16.gmra.mxu0 %v352
      %v424 = vpop.f32.mrf.mxu0
      %v425 = vadd.f32 %v287, %v424
      %v426 = vpop.f32.mrf.mxu0
      %v427 = vpop.f32.mrf.mxu0
      %v428 = vadd.f32 %v287, %v427
      %v429 = vpop.f32.mrf.mxu0
      %430 = vmatprep.mubr.bf16.mxu0 0
      %431 = vmatmul.mubr.bf16.gmra.mxu0 %v355
      %v432 = vpop.f32.mrf.mxu0
      %v433 = vadd.f32 %v287, %v432
      %v434 = vpop.f32.mrf.mxu0
      %v435 = vpop.f32.mrf.mxu0
      %v436 = vadd.f32 %v287, %v435
      %v437 = vpop.f32.mrf.mxu0
      %438 = vmatprep.mubr.bf16.mxu0 0
      %439 = vmatmul.mubr.bf16.gmra.mxu0 %v358
      %v440 = vpop.f32.mrf.mxu0
      %v441 = vadd.f32 %v287, %v440
      %v442 = vpop.f32.mrf.mxu0
      %v443 = vpop.f32.mrf.mxu0
      %v444 = vadd.f32 %v287, %v443
      %v445 = vpop.f32.mrf.mxu0
      %446 = vmatprep.mubr.bf16.mxu0 0
      %447 = vmatmul.mubr.bf16.gmra.mxu0 %v361
      %v448 = vpop.f32.mrf.mxu0
      %v449 = vadd.f32 %v287, %v448
      %v450 = vpop.f32.mrf.mxu0
      %v451 = vpop.f32.mrf.mxu0
      %v452 = vadd.f32 %v287, %v451
      %v453 = vpop.f32.mrf.mxu0
      %454 = vmatprep.mubr.bf16.mxu0 0
      %455 = vmatmul.mubr.bf16.gmra.mxu0 %v364
      %v456 = vpop.f32.mrf.mxu0
      %v457 = vadd.f32 %v287, %v456
      %v458 = vpop.f32.mrf.mxu0
      %v459 = vpop.f32.mrf.mxu0
      %v460 = vadd.f32 %v287, %v459
      %v461 = vpop.f32.mrf.mxu0
      %462 = vdwg.mxu0
      %v463 = vpack.c.bf16 %v404, %v401
      %v464 = vpack.c.bf16 %v412, %v409
      %v465 = vpack.c.bf16 %v420, %v417
      %v466 = vpack.c.bf16 %v428, %v425
      %v467 = vpack.c.bf16 %v436, %v433
      %v468 = vpack.c.bf16 %v444, %v441
      %v469 = vpack.c.bf16 %v452, %v449
      %v470 = vpack.c.bf16 %v460, %v457
      %v479 = vunpack.c.l.b16 %v463
      %v480 = vunpack.c.h.b16 %v463
      %v481 = vunpack.c.l.b16 %v464
      %v482 = vunpack.c.h.b16 %v464
      %v483 = vunpack.c.l.b16 %v465
      %v484 = vunpack.c.h.b16 %v465
      %v485 = vunpack.c.l.b16 %v466
      %v486 = vunpack.c.h.b16 %v466
      %v487 = vunpack.c.l.b16 %v467
      %v488 = vunpack.c.h.b16 %v467
      %v489 = vunpack.c.l.b16 %v468
      %v490 = vunpack.c.h.b16 %v468
      %v491 = vunpack.c.l.b16 %v469
      %v492 = vunpack.c.h.b16 %v469
      %v493 = vunpack.c.l.b16 %v470
      %v494 = vunpack.c.h.b16 %v470
      %v495 = vpack.c.b16 %v479, %v479
      %v496 = vpack.c.b16 %v480, %v480
      %v497 = vpack.c.b16 %v481, %v481
      %v498 = vpack.c.b16 %v482, %v482
      %v499 = vpack.c.b16 %v483, %v483
      %v500 = vpack.c.b16 %v484, %v484
      %v501 = vpack.c.b16 %v485, %v485
      %v502 = vpack.c.b16 %v486, %v486
      %v503 = vpack.c.b16 %v487, %v487
      %v504 = vpack.c.b16 %v488, %v488
      %v505 = vpack.c.b16 %v489, %v489
      %v506 = vpack.c.b16 %v490, %v490
      %v507 = vpack.c.b16 %v491, %v491
      %v508 = vpack.c.b16 %v492, %v492
      %v509 = vpack.c.b16 %v493, %v493
      %v510 = vpack.c.b16 %v494, %v494
      %vm527 = vcmask 257024
      %528 = vst.msk [vmem:[%s249] sm:$0xf] %vm527, %v495
      %529 = vst.msk [vmem:[%s249 + $0x4] sm:$0xf] %vm527, %v496
      %530 = vst.msk [vmem:[%s249 + $0x8] sm:$0xf] %vm527, %v497
      %531 = vst.msk [vmem:[%s249 + $0xc] sm:$0xf] %vm527, %v498
      %532 = vst.msk [vmem:[%s249 + $0x10] sm:$0xf] %vm527, %v499
      %533 = vst.msk [vmem:[%s249 + $0x14] sm:$0xf] %vm527, %v500
      %534 = vst.msk [vmem:[%s249 + $0x18] sm:$0xf] %vm527, %v501
      %535 = vst.msk [vmem:[%s249 + $0x1c] sm:$0xf] %vm527, %v502
      %536 = vst.msk [vmem:[%s249 + $0x20] sm:$0xf] %vm527, %v503
      %537 = vst.msk [vmem:[%s249 + $0x24] sm:$0xf] %vm527, %v504
      %538 = vst.msk [vmem:[%s249 + $0x28] sm:$0xf] %vm527, %v505
      %539 = vst.msk [vmem:[%s249 + $0x2c] sm:$0xf] %vm527, %v506
      %540 = vst.msk [vmem:[%s249 + $0x30] sm:$0xf] %vm527, %v507
      %541 = vst.msk [vmem:[%s249 + $0x34] sm:$0xf] %vm527, %v508
      %542 = vst.msk [vmem:[%s249 + $0x38] sm:$0xf] %vm527, %v509
      %543 = vst.msk [vmem:[%s249 + $0x3c] sm:$0xf] %vm527, %v510
      %544 = vrot.lane.b32.xlu0 %v495, 96
      %v545 = vpop.permute.xlu0 %544
      %546 = vrot.lane.b32.xlu0 %v496, 96
      %v547 = vpop.permute.xlu0 %546
      %548 = vrot.lane.b32.xlu0 %v497, 96
      %v549 = vpop.permute.xlu0 %548
      %550 = vrot.lane.b32.xlu0 %v498, 96
      %v551 = vpop.permute.xlu0 %550
      %552 = vrot.lane.b32.xlu0 %v499, 96
      %v553 = vpop.permute.xlu0 %552
      %554 = vrot.lane.b32.xlu0 %v500, 96
      %v555 = vpop.permute.xlu0 %554
      %556 = vrot.lane.b32.xlu0 %v501, 96
      %v557 = vpop.permute.xlu0 %556
      %558 = vrot.lane.b32.xlu0 %v502, 96
      %v559 = vpop.permute.xlu0 %558
      %560 = vrot.lane.b32.xlu0 %v503, 96
      %v561 = vpop.permute.xlu0 %560
      %562 = vrot.lane.b32.xlu0 %v504, 96
      %v563 = vpop.permute.xlu0 %562
      %564 = vrot.lane.b32.xlu0 %v505, 96
      %v565 = vpop.permute.xlu0 %564
      %566 = vrot.lane.b32.xlu0 %v506, 96
      %v567 = vpop.permute.xlu0 %566
      %568 = vrot.lane.b32.xlu0 %v507, 96
      %v569 = vpop.permute.xlu0 %568
      %570 = vrot.lane.b32.xlu0 %v508, 96
      %v571 = vpop.permute.xlu0 %570
      %572 = vrot.lane.b32.xlu0 %v509, 96
      %v573 = vpop.permute.xlu0 %572
      %574 = vrot.lane.b32.xlu0 %v510, 96
      %v575 = vpop.permute.xlu0 %574
      %592 = vst.msk [vmem:[%s259] sm:$0xf] %vm527, %v545
      %593 = vst.msk [vmem:[%s259 + $0x4] sm:$0xf] %vm527, %v547
      %594 = vst.msk [vmem:[%s259 + $0x8] sm:$0xf] %vm527, %v549
      %595 = vst.msk [vmem:[%s259 + $0xc] sm:$0xf] %vm527, %v551
      %596 = vst.msk [vmem:[%s259 + $0x10] sm:$0xf] %vm527, %v553
      %597 = vst.msk [vmem:[%s259 + $0x14] sm:$0xf] %vm527, %v555
      %598 = vst.msk [vmem:[%s259 + $0x18] sm:$0xf] %vm527, %v557
      %599 = vst.msk [vmem:[%s259 + $0x1c] sm:$0xf] %vm527, %v559
      %600 = vst.msk [vmem:[%s259 + $0x20] sm:$0xf] %vm527, %v561
      %601 = vst.msk [vmem:[%s259 + $0x24] sm:$0xf] %vm527, %v563
      %602 = vst.msk [vmem:[%s259 + $0x28] sm:$0xf] %vm527, %v565
      %603 = vst.msk [vmem:[%s259 + $0x2c] sm:$0xf] %vm527, %v567
      %604 = vst.msk [vmem:[%s259 + $0x30] sm:$0xf] %vm527, %v569
      %605 = vst.msk [vmem:[%s259 + $0x34] sm:$0xf] %vm527, %v571
      %606 = vst.msk [vmem:[%s259 + $0x38] sm:$0xf] %vm527, %v573
      %607 = vst.msk [vmem:[%s259 + $0x3c] sm:$0xf] %vm527, %v575
      %s608 = smul.u32 16, %s21
      %p609 = scmp.lt.s32.totalorder %s20, 1
      %s610 = scalar_select %p609, %s20, 1
      %p611 = scmp.lt.s32.totalorder %s608, 15
      %s612 = scalar_select %p611, %s608, 15
      %s613 = smul.addr %s610, 16
      %s614 = sadd.s32 %s612, %s613
      %s615 = smul.addr %s614, 4
      %s616 = scalar_lea.vmem %s3, %s615
      %s617 = smul.u32 16, %s21
      %p618 = scmp.lt.s32.totalorder %s20, 1
      %s619 = scalar_select %p618, %s20, 1
      %p620 = scmp.lt.s32.totalorder %s617, 15
      %s621 = scalar_select %p620, %s617, 15
      %s622 = smul.addr %s619, 16
      %s623 = sadd.s32 %s621, %s622
      %s624 = smul.addr %s623, 4
      %s625 = scalar_lea.vmem %s4, %s624
      // Predicated region
      $region33: #{tpu_custom_call.1} parent=31 // pred_check
        %p626 = pneg %p118
      $region34: #{tpu_custom_call.1} parent=31 // pred_check_branch
        %628 = sbr.rel (%p626) target = $region36
      $region35: #{tpu_custom_call.1} parent=31 // pred_region
        %s629 = smul.u32 16, %s21
      $region36: #{tpu_custom_call.1} parent=31 // pred_fallthru
        _
      // Predicated region
      $region37: #{tpu_custom_call.1} parent=31 // pred_check
        %p630 = pneg %p146
      $region38: #{tpu_custom_call.1} parent=31 // pred_check_branch
        %632 = sbr.rel (%p630) target = $region40
      $region39: #{tpu_custom_call.1} parent=31 // pred_region
        %s633 = smul.u32 16, %s21
      $region40: #{tpu_custom_call.1} parent=31 // pred_fallthru
        _
    $region32: #{tpu_custom_call.1} parent=5 // pred_fallthru
      _
    %p634 = scmp.le.s32.totalorder 2, %s11
    // Predicated region
    $region41: #{tpu_custom_call.1} parent=5 // pred_check
      %p635 = pneg %p634
    $region42: #{tpu_custom_call.1} parent=5 // pred_check_branch
      %637 = sbr.rel (%p635) target = $region44
    $region43: #{tpu_custom_call.1} parent=5 // pred_region
      %s638 = ssub.s32 %s11, 2
      // Predicated region
      $region45: #{tpu_custom_call.1} parent=43 // pred_check
        %p639 = pneg %p124
      $region46: #{tpu_custom_call.1} parent=43 // pred_check_branch
        %641 = sbr.rel (%p639) target = $region48
      $region47: #{tpu_custom_call.1} parent=43 // pred_region
        %s642 = smul.u32 16, %s23
        %p643 = scmp.lt.s32.totalorder %s22, 1
        %s644 = scalar_select %p643, %s22, 1
        %p645 = scmp.lt.s32.totalorder %s642, 15
        %s646 = scalar_select %p645, %s642, 15
        %s647 = smul.addr %s644, 16
        %s648 = sadd.s32 %s646, %s647
        %s649 = smul.addr %s648, 4
        %s650 = scalar_lea.vmem %s3, %s649
      $region48: #{tpu_custom_call.1} parent=43 // pred_fallthru
        _
      // Predicated region
      $region49: #{tpu_custom_call.1} parent=43 // pred_check
        %p651 = pneg %p152
      $region50: #{tpu_custom_call.1} parent=43 // pred_check_branch
        %653 = sbr.rel (%p651) target = $region52
      $region51: #{tpu_custom_call.1} parent=43 // pred_region
        %s654 = smul.u32 16, %s23
        %p655 = scmp.lt.s32.totalorder %s22, 1
        %s656 = scalar_select %p655, %s22, 1
        %p657 = scmp.lt.s32.totalorder %s654, 15
        %s658 = scalar_select %p657, %s654, 15
        %s659 = smul.addr %s656, 16
        %s660 = sadd.s32 %s658, %s659
        %s661 = smul.addr %s660, 4
        %s662 = scalar_lea.vmem %s4, %s661
      $region52: #{tpu_custom_call.1} parent=43 // pred_fallthru
        _
    $region44: #{tpu_custom_call.1} parent=5 // pred_fallthru
      _
  $region6: #{tpu_custom_call.1} parent=0 // loop_footer
    %s15 = sadd.s32 1, %s11
  $region7: #{tpu_custom_call.1} parent=0 // loop_footer_branch
    %10 = sbr.rel target = $region3
  $region8: #{tpu_custom_call.1} parent=0 // loop_exit
    _

</llo_original>
